<compile_context>
chip_gen: v5e
topology: v5e:2x2
jax: 0.10.0
libtpu: 0.0.40
codegen_flags: <defaults>
</compile_context>

<pallas_src>
import jax
import jax.numpy as jnp
from jax.experimental import pallas as pl
from jax.experimental.pallas import tpu as pltpu

EPS = 1e-5  # nn.BatchNorm2d default eps


def _round_up(a: int, b: int) -> int:
    return (a + b - 1) // b * b


def sparse_conv_block(x, w, b, gamma, beta, *, tile_m: int = 256):
    """x: (N, Cin, H, W) f32 NCHW; w: (Cout, Cin, KH, KW); b/gamma/beta: (Cout,)."""
    N, Cin, H, W = x.shape
    Cout, _, KH, KW = w.shape
    Ho, Wo = H - KH + 1, W - KW + 1     # nn.Conv2d defaults: stride=1, padding=0

    M = N * Ho * Wo                      # output pixels (lane dim of the kernel)
    K = Cin * KH * KW                    # contraction dim
    Kp = _round_up(K, 16)                # bf16 sublane packing
    Cp = _round_up(Cout, 8)
    tile_m = max(128, _round_up(tile_m, 128))
    tile_m = min(tile_m, _round_up(M, 128))   # don't tile wider than needed
    Mp = _round_up(M, tile_m)
    n_tiles = Mp // tile_m

    # ---- glue: transposed im2col (K, M): rows = (ci, kh, kw), cols = (n, ho, wo)
    cols = []
    for i in range(KH):
        for j in range(KW):
            cols.append(x[:, :, i:i + Ho, j:j + Wo])        # (N, Cin, Ho, Wo)
    p = jnp.stack(cols, axis=2)                             # (N, Cin, KH*KW, Ho, Wo)
    p_t = p.transpose(1, 2, 0, 3, 4).reshape(K, M)
    p_t = jnp.pad(p_t, ((0, Kp - K), (0, Mp - M))).astype(jnp.bfloat16)

    w_t = jnp.pad(w.reshape(Cout, K), ((0, Cp - Cout), (0, Kp - K))).astype(jnp.bfloat16)
    b_p = jnp.pad(b, (0, Cp - Cout)).reshape(Cp, 1).astype(jnp.float32)
    g_p = jnp.pad(gamma, (0, Cp - Cout)).reshape(Cp, 1).astype(jnp.float32)
    bt_p = jnp.pad(beta, (0, Cp - Cout)).reshape(Cp, 1).astype(jnp.float32)

    inv_m = 1.0 / M               # python constant, folded into the kernel
    needs_mask = (Mp != M)        # padded M columns must not bias BN stats

    # Cache the ReLU activations of phase 0 in resident VMEM when they fit, so
    # phase 1 skips both the matmul and the patch DMA.
    cache_bytes = n_tiles * Cp * tile_m * 4
    use_cache = cache_bytes <= 8 * 1024 * 1024

    def kernel(p_ref, w_ref, b_ref, g_ref, beta_ref, o_ref,
               s1_ref, s2_ref, scale_ref, shift_ref, *cache):
        phase = pl.program_id(0)   # 0: accumulate BN stats, 1: normalize + store
        mi = pl.program_id(1)      # M-tile index

        def conv_relu():
            acc = jnp.dot(w_ref[...], p_ref[...],
                          preferred_element_type=jnp.float32)
            return jnp.maximum(acc + b_ref[...], 0.0)        # (Cp, tile_m) f32

        @pl.when(jnp.logical_and(phase == 0, mi == 0))
        def _init():
            s1_ref[...] = jnp.zeros_like(s1_ref)
            s2_ref[...] = jnp.zeros_like(s2_ref)

        @pl.when(phase == 0)
        def _stats():
            relu = conv_relu()
            if use_cache:
                cache[0][mi] = relu                          # keep for phase 1
            if needs_mask:
                col = mi * tile_m + jax.lax.broadcasted_iota(
                    jnp.int32, relu.shape, 1)
                relu = jnp.where(col < M, relu, 0.0)
            s1_ref[...] += jnp.sum(relu, axis=1, keepdims=True)
            s2_ref[...] += jnp.sum(relu * relu, axis=1, keepdims=True)

        @pl.when(jnp.logical_and(phase == 1, mi == 0))
        def _finalize():
            mean = s1_ref[...] * inv_m
            var = jnp.maximum(s2_ref[...] * inv_m - mean * mean, 0.0)  # biased
            gi = g_ref[...] * jax.lax.rsqrt(var + EPS)
            scale_ref[...] = gi
            shift_ref[...] = beta_ref[...] - mean * gi

        @pl.when(phase == 1)
        def _store():
            relu = cache[0][mi] if use_cache else conv_relu()
            o_ref[...] = relu * scale_ref[...] + shift_ref[...]

    if use_cache:
        # Phase 1 never reads the patches; pin its block index to the last
        # phase-0 block so no extra patch DMA is issued during phase 1.
        p_map = lambda p_, m_: (0, m_ * (1 - p_) + (n_tiles - 1) * p_)
    else:
        p_map = lambda p_, m_: (0, m_)

    matmul_passes = 1 if use_cache else 2
    flops = matmul_passes * 2 * Cp * Kp * Mp + 10 * Cp * Mp
    bytes_accessed = (matmul_passes * Kp * Mp * 2 + Cp * Kp * 2
                      + Cp * Mp * 4 + 3 * Cp * 4)

    scratch = [pltpu.VMEM((Cp, 1), jnp.float32)] * 4         # s1, s2, scale, shift
    if use_cache:
        scratch.append(pltpu.VMEM((n_tiles, Cp, tile_m), jnp.float32))

    out_t = pl.pallas_call(
        kernel,
        out_shape=jax.ShapeDtypeStruct((Cp, Mp), jnp.float32),
        grid_spec=pltpu.PrefetchScalarGridSpec(
            num_scalar_prefetch=0,
            grid=(2, n_tiles),                       # (phase, M tiles); last axis fastest
            in_specs=[
                pl.BlockSpec((Kp, tile_m), p_map),                    # patches_T tile
                pl.BlockSpec((Cp, Kp), lambda p_, m_: (0, 0)),        # weights_T (resident)
                pl.BlockSpec((Cp, 1), lambda p_, m_: (0, 0)),         # conv bias
                pl.BlockSpec((Cp, 1), lambda p_, m_: (0, 0)),         # BN gamma
                pl.BlockSpec((Cp, 1), lambda p_, m_: (0, 0)),         # BN beta
            ],
            # During phase 0 nothing is stored; map all phase-0 steps to block 0 so
            # the (never-written) buffer is not flushed until phase 1 overwrites it.
            out_specs=pl.BlockSpec((Cp, tile_m), lambda p_, m_: (0, m_ * p_)),
            scratch_shapes=scratch,
        ),
        compiler_params=pltpu.CompilerParams(
            dimension_semantics=("arbitrary", "arbitrary"),  # stats carry across both axes
            vmem_limit_bytes=32 * 1024 * 1024,               # safe on v5e/v6e/v7x
        ),
        cost_estimate=pl.CostEstimate(
            flops=flops, transcendentals=Cp, bytes_accessed=bytes_accessed),
    )(p_t, w_t, b_p, g_p, bt_p)

    # (Cout, M) -> (N, Cout, Ho, Wo); last two dims already contiguous (cheap).
    return out_t[:Cout, :M].reshape(Cout, N, Ho, Wo).transpose(1, 0, 2, 3)


def reference(x, w, b, gamma, beta):
    """Pure-JAX reference of the PyTorch forward (training-mode BN), with the
    same bf16-operand / f32-accumulation matmul numerics as the kernel."""
    conv = jax.lax.conv_general_dilated(
        x.astype(jnp.bfloat16), w.astype(jnp.bfloat16),
        window_strides=(1, 1), padding="VALID",
        dimension_numbers=("NCHW", "OIHW", "NCHW"),
        preferred_element_type=jnp.float32)
    conv = conv + b.reshape(1, -1, 1, 1)
    relu = jnp.maximum(conv, 0.0)
    mean = relu.mean(axis=(0, 2, 3), keepdims=True)
    var = jnp.square(relu - mean).mean(axis=(0, 2, 3), keepdims=True)  # biased
    return ((relu - mean) * jax.lax.rsqrt(var + EPS)
            * gamma.reshape(1, -1, 1, 1) + beta.reshape(1, -1, 1, 1))


if __name__ == "__main__":
    # Small LeNet5-style shapes: batch=2, Cin=4, 16x16 spatial, Cout=8, 3x3 kernel
    N, Cin, H, W = 2, 4, 16, 16
    Cout, KH, KW = 8, 3, 3

    key = jax.random.PRNGKey(0)
    kx, kw_, kb = jax.random.split(key, 3)
    x = jax.random.normal(kx, (N, Cin, H, W), dtype=jnp.float32)
    w = jax.random.normal(kw_, (Cout, Cin, KH, KW), dtype=jnp.float32) * 0.1
    b = jax.random.normal(kb, (Cout,), dtype=jnp.float32) * 0.1
    gamma = jnp.ones((Cout,), dtype=jnp.float32)   # BatchNorm2d default weight init
    beta = jnp.zeros((Cout,), dtype=jnp.float32)   # BatchNorm2d default bias init

    out = jax.block_until_ready(sparse_conv_block(x, w, b, gamma, beta))
    ref = jax.block_until_ready(reference(x, w, b, gamma, beta))

    assert out.shape == (N, Cout, H - KH + 1, W - KW + 1)
    assert jnp.allclose(out, ref, atol=2e-3, rtol=2e-3), (
        f"mismatch vs reference, max abs err={float(jnp.max(jnp.abs(out - ref)))}")

    print("KERNEL_OK")
</pallas_src>

<mosaic_0001>
module attributes {stable_mosaic.version = 11 : i64} {
  func.func @kernel(%arg0: i32, %arg1: i32, %arg2: memref<48x256xbf16, #tpu.memory_space<vmem>>, %arg3: memref<8x48xbf16, #tpu.memory_space<vmem>>, %arg4: memref<8x1xf32, #tpu.memory_space<vmem>>, %arg5: memref<8x1xf32, #tpu.memory_space<vmem>>, %arg6: memref<8x1xf32, #tpu.memory_space<vmem>>, %arg7: memref<8x256xf32, #tpu.memory_space<vmem>>, %arg8: memref<8x1xf32, #tpu.memory_space<vmem>>, %arg9: memref<8x1xf32, #tpu.memory_space<vmem>>, %arg10: memref<8x1xf32, #tpu.memory_space<vmem>>, %arg11: memref<8x1xf32, #tpu.memory_space<vmem>>, %arg12: memref<2x8x256xf32, #tpu.memory_space<vmem>>) attributes {dimension_semantics = [#tpu.dimension_semantics<arbitrary>, #tpu.dimension_semantics<arbitrary>], iteration_bounds = array<i64: 2, 2>, scalar_prefetch = 0 : i64, scratch_operands = 5 : i64, tpu.core_type = #tpu.core_type<tc>, window_params = [{transform_indices = @transform_0, window_bounds = array<i64: 48, 256>}, {pipeline_mode = #tpu.pipeline_mode<synchronous>, transform_indices = @transform_1, window_bounds = array<i64: 8, 48>}, {pipeline_mode = #tpu.pipeline_mode<synchronous>, transform_indices = @transform_2, window_bounds = array<i64: 8, 1>}, {pipeline_mode = #tpu.pipeline_mode<synchronous>, transform_indices = @transform_3, window_bounds = array<i64: 8, 1>}, {pipeline_mode = #tpu.pipeline_mode<synchronous>, transform_indices = @transform_4, window_bounds = array<i64: 8, 1>}, {transform_indices = @transform_5, window_bounds = array<i64: 8, 256>}]} {
    %c0_i32 = arith.constant 0 : i32
    %0 = arith.cmpi eq, %arg0, %c0_i32 : i32
    %c0_i32_0 = arith.constant 0 : i32
    %1 = arith.cmpi eq, %arg1, %c0_i32_0 : i32
    %2 = arith.andi %0, %1 : i1
    %3 = arith.extui %2 : i1 to i32
    %c0_i32_1 = arith.constant 0 : i32
    %4 = arith.cmpi ne, %3, %c0_i32_1 : i32
    scf.if %4 {
      %cst = arith.constant 0.000000e+00 : f32
      %16 = vector.broadcast %cst : f32 to vector<8x1xf32>
      %c0 = arith.constant 0 : index
      %c0_8 = arith.constant 0 : index
      %17 = vector.load %arg8[%c0, %c0_8] : memref<8x1xf32, #tpu.memory_space<vmem>>, vector<8x1xf32>
      tpu.vector_store %arg8[%c0, %c0_8], %16 {strides = array<i32>} : memref<8x1xf32, #tpu.memory_space<vmem>>, vector<8x1xf32>,
      %cst_9 = arith.constant 0.000000e+00 : f32
      %18 = vector.broadcast %cst_9 : f32 to vector<8x1xf32>
      %c0_10 = arith.constant 0 : index
      %c0_11 = arith.constant 0 : index
      %19 = vector.load %arg9[%c0_10, %c0_11] : memref<8x1xf32, #tpu.memory_space<vmem>>, vector<8x1xf32>
      tpu.vector_store %arg9[%c0_10, %c0_11], %18 {strides = array<i32>} : memref<8x1xf32, #tpu.memory_space<vmem>>, vector<8x1xf32>,
    } else {
    }
    %c0_i32_2 = arith.constant 0 : i32
    %5 = arith.cmpi eq, %arg0, %c0_i32_2 : i32
    %6 = arith.extui %5 : i1 to i32
    %c0_i32_3 = arith.constant 0 : i32
    %7 = arith.cmpi ne, %6, %c0_i32_3 : i32
    scf.if %7 {
      %c0 = arith.constant 0 : index
      %c0_8 = arith.constant 0 : index
      %16 = vector.load %arg3[%c0, %c0_8] : memref<8x48xbf16, #tpu.memory_space<vmem>>, vector<8x48xbf16>
      %c0_9 = arith.constant 0 : index
      %c0_10 = arith.constant 0 : index
      %17 = vector.load %arg2[%c0_9, %c0_10] : memref<48x256xbf16, #tpu.memory_space<vmem>>, vector<48x256xbf16>
      %cst = arith.constant dense<0.000000e+00> : vector<8x256xf32>
      %18 = tpu.matmul %16, %17, %cst {dimension_numbers = #tpu.dot_dimension_numbers<[1], [0], [0], [1], [0, 0, 1, 1], [], []>} : vector<8x48xbf16>, vector<48x256xbf16>, vector<8x256xf32> -> vector<8x256xf32>
      %c0_11 = arith.constant 0 : index
      %c0_12 = arith.constant 0 : index
      %19 = vector.load %arg4[%c0_11, %c0_12] : memref<8x1xf32, #tpu.memory_space<vmem>>, vector<8x1xf32>
      %20 = vector.broadcast %19 : vector<8x1xf32> to vector<8x256xf32>
      %21 = arith.addf %18, %20 : vector<8x256xf32>
      %cst_13 = arith.constant 0.000000e+00 : f32
      %22 = vector.broadcast %cst_13 : f32 to vector<8x256xf32>
      %23 = arith.maximumf %21, %22 : vector<8x256xf32>
      %24 = arith.index_cast %arg1 : i32 to index
      %c0_14 = arith.constant 0 : index
      %c0_15 = arith.constant 0 : index
      %25 = vector.load %arg12[%24, %c0_14, %c0_15] : memref<2x8x256xf32, #tpu.memory_space<vmem>>, vector<1x8x256xf32>
      %26 = vector.shape_cast %25 : vector<1x8x256xf32> to vector<8x256xf32>
      %27 = vector.shape_cast %23 : vector<8x256xf32> to vector<1x8x256xf32>
      tpu.vector_store %arg12[%24, %c0_14, %c0_15], %27 {strides = array<i32>} : memref<2x8x256xf32, #tpu.memory_space<vmem>>, vector<1x8x256xf32>,
      %c256_i32 = arith.constant 256 : i32
      %28 = arith.muli %arg1, %c256_i32 : i32
      %29 = tpu.iota {dimensions = array<i32: 1>} : vector<8x256xi32>
      %30 = vector.broadcast %28 : i32 to vector<8x256xi32>
      %31 = arith.addi %30, %29 : vector<8x256xi32>
      %c392_i32 = arith.constant 392 : i32
      %32 = vector.broadcast %c392_i32 : i32 to vector<8x256xi32>
      %33 = arith.cmpi slt, %31, %32 : vector<8x256xi32>
      %cst_16 = arith.constant 0.000000e+00 : f32
      %34 = vector.broadcast %cst_16 : f32 to vector<8x256xf32>
      %35 = arith.select %33, %23, %34 : vector<8x256xi1>, vector<8x256xf32>
      %c0_17 = arith.constant 0 : index
      %c0_18 = arith.constant 0 : index
      %36 = vector.load %arg8[%c0_17, %c0_18] : memref<8x1xf32, #tpu.memory_space<vmem>>, vector<8x1xf32>
      %cst_19 = arith.constant dense<0.000000e+00> : vector<8xf32>
      %37 = vector.multi_reduction <add>, %35, %cst_19 [1] : vector<8x256xf32> to vector<8xf32>
      %38 = vector.shape_cast %37 : vector<8xf32> to vector<8x1xf32>
      %39 = arith.addf %36, %38 : vector<8x1xf32>
      %c0_20 = arith.constant 0 : index
      %c0_21 = arith.constant 0 : index
      %40 = vector.load %arg8[%c0_20, %c0_21] : memref<8x1xf32, #tpu.memory_space<vmem>>, vector<8x1xf32>
      tpu.vector_store %arg8[%c0_20, %c0_21], %39 {strides = array<i32>} : memref<8x1xf32, #tpu.memory_space<vmem>>, vector<8x1xf32>,
      %c0_22 = arith.constant 0 : index
      %c0_23 = arith.constant 0 : index
      %41 = vector.load %arg9[%c0_22, %c0_23] : memref<8x1xf32, #tpu.memory_space<vmem>>, vector<8x1xf32>
      %42 = arith.mulf %35, %35 : vector<8x256xf32>
      %cst_24 = arith.constant dense<0.000000e+00> : vector<8xf32>
      %43 = vector.multi_reduction <add>, %42, %cst_24 [1] : vector<8x256xf32> to vector<8xf32>
      %44 = vector.shape_cast %43 : vector<8xf32> to vector<8x1xf32>
      %45 = arith.addf %41, %44 : vector<8x1xf32>
      %c0_25 = arith.constant 0 : index
      %c0_26 = arith.constant 0 : index
      %46 = vector.load %arg9[%c0_25, %c0_26] : memref<8x1xf32, #tpu.memory_space<vmem>>, vector<8x1xf32>
      tpu.vector_store %arg9[%c0_25, %c0_26], %45 {strides = array<i32>} : memref<8x1xf32, #tpu.memory_space<vmem>>, vector<8x1xf32>,
    } else {
    }
    %c1_i32 = arith.constant 1 : i32
    %8 = arith.cmpi eq, %arg0, %c1_i32 : i32
    %c0_i32_4 = arith.constant 0 : i32
    %9 = arith.cmpi eq, %arg1, %c0_i32_4 : i32
    %10 = arith.andi %8, %9 : i1
    %11 = arith.extui %10 : i1 to i32
    %c0_i32_5 = arith.constant 0 : i32
    %12 = arith.cmpi ne, %11, %c0_i32_5 : i32
    scf.if %12 {
      %c0 = arith.constant 0 : index
      %c0_8 = arith.constant 0 : index
      %16 = vector.load %arg8[%c0, %c0_8] : memref<8x1xf32, #tpu.memory_space<vmem>>, vector<8x1xf32>
      %cst = arith.constant 0.00255102036 : f32
      %17 = vector.broadcast %cst : f32 to vector<8x1xf32>
      %18 = arith.mulf %16, %17 : vector<8x1xf32>
      %c0_9 = arith.constant 0 : index
      %c0_10 = arith.constant 0 : index
      %19 = vector.load %arg9[%c0_9, %c0_10] : memref<8x1xf32, #tpu.memory_space<vmem>>, vector<8x1xf32>
      %cst_11 = arith.constant 0.00255102036 : f32
      %20 = vector.broadcast %cst_11 : f32 to vector<8x1xf32>
      %21 = arith.mulf %19, %20 : vector<8x1xf32>
      %22 = arith.mulf %18, %18 : vector<8x1xf32>
      %23 = arith.subf %21, %22 : vector<8x1xf32>
      %cst_12 = arith.constant 0.000000e+00 : f32
      %24 = vector.broadcast %cst_12 : f32 to vector<8x1xf32>
      %25 = arith.maximumf %23, %24 : vector<8x1xf32>
      %c0_13 = arith.constant 0 : index
      %c0_14 = arith.constant 0 : index
      %26 = vector.load %arg5[%c0_13, %c0_14] : memref<8x1xf32, #tpu.memory_space<vmem>>, vector<8x1xf32>
      %cst_15 = arith.constant 9.99999974E-6 : f32
      %27 = vector.broadcast %cst_15 : f32 to vector<8x1xf32>
      %28 = arith.addf %25, %27 : vector<8x1xf32>
      %29 = math.rsqrt %28 : vector<8x1xf32>
      %30 = arith.mulf %26, %29 : vector<8x1xf32>
      %c0_16 = arith.constant 0 : index
      %c0_17 = arith.constant 0 : index
      %31 = vector.load %arg10[%c0_16, %c0_17] : memref<8x1xf32, #tpu.memory_space<vmem>>, vector<8x1xf32>
      tpu.vector_store %arg10[%c0_16, %c0_17], %30 {strides = array<i32>} : memref<8x1xf32, #tpu.memory_space<vmem>>, vector<8x1xf32>,
      %c0_18 = arith.constant 0 : index
      %c0_19 = arith.constant 0 : index
      %32 = vector.load %arg6[%c0_18, %c0_19] : memref<8x1xf32, #tpu.memory_space<vmem>>, vector<8x1xf32>
      %33 = arith.mulf %18, %30 : vector<8x1xf32>
      %34 = arith.subf %32, %33 : vector<8x1xf32>
      %c0_20 = arith.constant 0 : index
      %c0_21 = arith.constant 0 : index
      %35 = vector.load %arg11[%c0_20, %c0_21] : memref<8x1xf32, #tpu.memory_space<vmem>>, vector<8x1xf32>
      tpu.vector_store %arg11[%c0_20, %c0_21], %34 {strides = array<i32>} : memref<8x1xf32, #tpu.memory_space<vmem>>, vector<8x1xf32>,
    } else {
    }
    %c1_i32_6 = arith.constant 1 : i32
    %13 = arith.cmpi eq, %arg0, %c1_i32_6 : i32
    %14 = arith.extui %13 : i1 to i32
    %c0_i32_7 = arith.constant 0 : i32
    %15 = arith.cmpi ne, %14, %c0_i32_7 : i32
    scf.if %15 {
      %16 = arith.index_cast %arg1 : i32 to index
      %c0 = arith.constant 0 : index
      %c0_8 = arith.constant 0 : index
      %17 = vector.load %arg12[%16, %c0, %c0_8] : memref<2x8x256xf32, #tpu.memory_space<vmem>>, vector<1x8x256xf32>
      %18 = vector.shape_cast %17 : vector<1x8x256xf32> to vector<8x256xf32>
      %c0_9 = arith.constant 0 : index
      %c0_10 = arith.constant 0 : index
      %19 = vector.load %arg10[%c0_9, %c0_10] : memref<8x1xf32, #tpu.memory_space<vmem>>, vector<8x1xf32>
      %20 = vector.broadcast %19 : vector<8x1xf32> to vector<8x256xf32>
      %21 = arith.mulf %18, %20 : vector<8x256xf32>
      %c0_11 = arith.constant 0 : index
      %c0_12 = arith.constant 0 : index
      %22 = vector.load %arg11[%c0_11, %c0_12] : memref<8x1xf32, #tpu.memory_space<vmem>>, vector<8x1xf32>
      %23 = vector.broadcast %22 : vector<8x1xf32> to vector<8x256xf32>
      %24 = arith.addf %21, %23 : vector<8x256xf32>
      %c0_13 = arith.constant 0 : index
      %c0_14 = arith.constant 0 : index
      %25 = vector.load %arg7[%c0_13, %c0_14] : memref<8x256xf32, #tpu.memory_space<vmem>>, vector<8x256xf32>
      tpu.vector_store %arg7[%c0_13, %c0_14], %24 {strides = array<i32>} : memref<8x256xf32, #tpu.memory_space<vmem>>, vector<8x256xf32>,
    } else {
    }
    return
  }
  func.func @transform_0(%arg0: i32, %arg1: i32) -> (i32, i32) {
    %c1_i32 = arith.constant 1 : i32
    %0 = arith.subi %c1_i32, %arg0 : i32
    %1 = arith.muli %arg1, %0 : i32
    %c1_i32_0 = arith.constant 1 : i32
    %2 = arith.muli %c1_i32_0, %arg0 : i32
    %3 = arith.addi %1, %2 : i32
    %c0_i32 = arith.constant 0 : i32
    %c0_i32_1 = arith.constant 0 : i32
    return %c0_i32, %3 : i32, i32
  }
  func.func @transform_1(%arg0: i32, %arg1: i32) -> (i32, i32) {
    %c0_i32 = arith.constant 0 : i32
    %c0_i32_0 = arith.constant 0 : i32
    %c0_i32_1 = arith.constant 0 : i32
    return %c0_i32, %c0_i32_0 : i32, i32
  }
  func.func @transform_2(%arg0: i32, %arg1: i32) -> (i32, i32) {
    %c0_i32 = arith.constant 0 : i32
    %c0_i32_0 = arith.constant 0 : i32
    %c0_i32_1 = arith.constant 0 : i32
    return %c0_i32, %c0_i32_0 : i32, i32
  }
  func.func @transform_3(%arg0: i32, %arg1: i32) -> (i32, i32) {
    %c0_i32 = arith.constant 0 : i32
    %c0_i32_0 = arith.constant 0 : i32
    %c0_i32_1 = arith.constant 0 : i32
    return %c0_i32, %c0_i32_0 : i32, i32
  }
  func.func @transform_4(%arg0: i32, %arg1: i32) -> (i32, i32) {
    %c0_i32 = arith.constant 0 : i32
    %c0_i32_0 = arith.constant 0 : i32
    %c0_i32_1 = arith.constant 0 : i32
    return %c0_i32, %c0_i32_0 : i32, i32
  }
  func.func @transform_5(%arg0: i32, %arg1: i32) -> (i32, i32) {
    %0 = arith.muli %arg1, %arg0 : i32
    %c0_i32 = arith.constant 0 : i32
    %c0_i32_0 = arith.constant 0 : i32
    return %c0_i32, %0 : i32, i32
  }
}

</mosaic_0001>

<llo_original>
// kernel: tpu_custom_call.1
$region0: #{tpu_custom_call.1}
  #allocation0 [shape = 'u32[]', space=smem, size = 0x4, offset = 0x4, fixed_abs, tag = 'smem constant byte address 0x4 - core index']
  #allocation1 [shape = 'u32[72,128]{1,0:T(1,128)}', space=vmem, size = 0x9000, scoped, tag = 'internal scratch']
  #allocation2 [shape = 'f32[8,1]{1,0:T(8,128)}', space=vmem, size = 0x1000, scoped, tag = 'scratch operand']
  #allocation3 [shape = 'f32[8,1]{1,0:T(8,128)}', space=vmem, size = 0x1000, scoped, tag = 'scratch operand']
  #allocation4 [shape = 'f32[8,1]{1,0:T(8,128)}', space=vmem, size = 0x1000, scoped, tag = 'scratch operand']
  #allocation5 [shape = 'f32[8,1]{1,0:T(8,128)}', space=vmem, size = 0x1000, scoped, tag = 'scratch operand']
  #allocation6 [shape = 'f32[2,8,256]{2,1,0:T(8,128)}', space=vmem, size = 0x4000, scoped, tag = 'scratch operand']
  %s0 = inlined_call_operand.hbm [shape: bf16[48,512], index: 0, kind: input, shape index: {}]
  %s1 = inlined_call_operand.vmem [shape: bf16[8,48], index: 1, kind: input, shape index: {}]
  %s2 = inlined_call_operand.vmem [shape: f32[8,1], index: 2, kind: input, shape index: {}]
  %s3 = inlined_call_operand.vmem [shape: f32[8,1], index: 3, kind: input, shape index: {}]
  %s4 = inlined_call_operand.vmem [shape: f32[8,1], index: 4, kind: input, shape index: {}]
  %s5 = inlined_call_operand.hbm [shape: f32[8,512], index: 5, kind: output, shape index: {}]
  %s6 = sld [smem:[#allocation0]]
  $region73: #{tpu_custom_call.1} parent=0
    _
  %s8 = ssub.s32 1, %s6
  %s9 = scalar_select 0, %s8, %s6
  $region1: #{tpu_custom_call.1} parent=0
    #allocation7 [shape = 'u8[49152]{0}', space=vmem, size = 0xc000, scoped, tag = 'input window, operand 0']
    #allocation8 [shape = 's32[2]{0}', space=sflag, size = 0x8, scoped, tag = 'scoped memory for tpu_custom_call.1']
    #allocation9 [shape = 's32[2]{0}', space=sflag, size = 0x8, scoped, tag = 'scoped memory for tpu_custom_call.1']
    #allocation10 [shape = 'u8[16384]{0}', space=vmem, size = 0x4000, scoped, tag = 'output window, operand 0']
    %10 = vsyncpa [#allocation8], 0
    %s11 = scalar_lea.sflag [#allocation8], 1
    %12 = vsyncpa %s11, 0
    %13 = vsyncpa [#allocation9], 0
    %s14 = scalar_lea.sflag [#allocation9], 1
    %15 = vsyncpa %s14, 0
    loop: start=0, step=1, limit=6
    $region2: #{tpu_custom_call.1} parent=1 // loop_pre_header
      _
    $region3: #{tpu_custom_call.1} parent=1 // loop_header
      %s17 = sphi 0, %s21
      %p18 = scmp.ge.s32.totalorder %s17, 6
      %s24 = sphi 0, %s36
      %s25 = sphi 0, %s32
      %s26 = sphi 0, %s24
      %s27 = sphi 0, %s25
      %s28 = sphi 0, %s26
      %s29 = sphi 0, %s27
      %s45 = sphi 0, %s47
      %s48 = sphi 0, %s45
      %s49 = sphi 0, %s48
      %s65 = sphi 0, %s49
      %s69 = sphi 0, %s69
      %s71 = sphi 0, %s69
      %s72 = sphi 0, %s71
      %s86 = sphi 0, %s72
      %s90 = sphi 0, %s90
      %s92 = sphi 0, %s90
      %s93 = sphi 0, %s92
      %s107 = sphi 0, %s93
      %s111 = sphi 0, %s111
      %s113 = sphi 0, %s111
      %s114 = sphi 0, %s113
      %s128 = sphi 0, %s114
      %s132 = sphi 0, %s132
      %s134 = sphi 0, %s132
      %s135 = sphi 0, %s134
      %s149 = sphi 0, %s135
      %s157 = sphi 0, %s159
      %s160 = sphi 0, %s157
      %s161 = sphi 0, %s160
      %s177 = sphi 0, %s161
    $region4: #{tpu_custom_call.1} parent=1 // loop_header_branch
      %20 = sbr.rel (%p18) target = $region8
    $region5: #{tpu_custom_call.1} parent=1 // loop_body
      %s22 = ssub.s32 %s17, 1
      %s23 = ssub.s32 %s17, 2
      %s30 = sadd.s32 1, %s25
      %p31 = scmp.ge.s32.totalorder %s30, 2
      %s32 = scalar_select %p31, 0, %s30
      %s33 = sadd.s32 1, %s24
      %s34 = scalar_select %p31, %s33, %s24
      %p35 = scmp.ge.s32.totalorder %s34, 2
      %s36 = scalar_select %p35, 0, %s34
      %s37 = ssub.s32 1, %s24
      %s38 = smul.u32 %s25, %s37
      %s39 = sadd.s32 %s38, %s24
      %s40 = ssub.s32 1, %s36
      %s41 = smul.u32 %s32, %s40
      %s42 = sadd.s32 %s41, %s36
      %s43 = ssub.s32 %s39, %s42
      %p44 = scmp.eq.s32.totalorder %s43, 0
      %s46 = sadd.s32 %s45, 1
      %s47 = scalar_select %p44, %s45, %s46
      %p50 = pneg %p44
      %p51 = scmp.eq.s32.totalorder %s17, 3
      %p52 = por %p50, %p51
      %p53 = scmp.ne.s32.totalorder %s45, %s48
      %p54 = scmp.eq.s32.totalorder %s17, 0
      %p55 = por %p53, %p54
      %p56 = scmp.ne.s32.totalorder %s45, %s48
      %p57 = scmp.eq.s32.totalorder %s22, 3
      %p58 = por %p56, %p57
      %p59 = scmp.ne.s32.totalorder %s48, %s49
      %p60 = scmp.eq.s32.totalorder %s22, 0
      %p61 = por %p59, %p60
      %p62 = scmp.ne.s32.totalorder %s48, %s49
      %p63 = scmp.eq.s32.totalorder %s23, 3
      %p64 = por %p62, %p63
      %p66 = scmp.ne.s32.totalorder %s49, %s65
      %p67 = scmp.eq.s32.totalorder %s23, 0
      %p68 = por %p66, %p67
      %s70 = sadd.s32 %s69, 1
      %p73 = scmp.eq.s32.totalorder %s17, 3
      %p74 = scmp.ne.s32.totalorder %s69, %s71
      %p75 = scmp.eq.s32.totalorder %s17, 0
      %p76 = por %p74, %p75
      %p77 = scmp.ne.s32.totalorder %s69, %s71
      %p78 = scmp.eq.s32.totalorder %s22, 3
      %p79 = por %p77, %p78
      %p80 = scmp.ne.s32.totalorder %s71, %s72
      %p81 = scmp.eq.s32.totalorder %s22, 0
      %p82 = por %p80, %p81
      %p83 = scmp.ne.s32.totalorder %s71, %s72
      %p84 = scmp.eq.s32.totalorder %s23, 3
      %p85 = por %p83, %p84
      %p87 = scmp.ne.s32.totalorder %s72, %s86
      %p88 = scmp.eq.s32.totalorder %s23, 0
      %p89 = por %p87, %p88
      %s91 = sadd.s32 %s90, 1
      %p94 = scmp.eq.s32.totalorder %s17, 3
      %p95 = scmp.ne.s32.totalorder %s90, %s92
      %p96 = scmp.eq.s32.totalorder %s17, 0
      %p97 = por %p95, %p96
      %p98 = scmp.ne.s32.totalorder %s90, %s92
      %p99 = scmp.eq.s32.totalorder %s22, 3
      %p100 = por %p98, %p99
      %p101 = scmp.ne.s32.totalorder %s92, %s93
      %p102 = scmp.eq.s32.totalorder %s22, 0
      %p103 = por %p101, %p102
      %p104 = scmp.ne.s32.totalorder %s92, %s93
      %p105 = scmp.eq.s32.totalorder %s23, 3
      %p106 = por %p104, %p105
      %p108 = scmp.ne.s32.totalorder %s93, %s107
      %p109 = scmp.eq.s32.totalorder %s23, 0
      %p110 = por %p108, %p109
      %s112 = sadd.s32 %s111, 1
      %p115 = scmp.eq.s32.totalorder %s17, 3
      %p116 = scmp.ne.s32.totalorder %s111, %s113
      %p117 = scmp.eq.s32.totalorder %s17, 0
      %p118 = por %p116, %p117
      %p119 = scmp.ne.s32.totalorder %s111, %s113
      %p120 = scmp.eq.s32.totalorder %s22, 3
      %p121 = por %p119, %p120
      %p122 = scmp.ne.s32.totalorder %s113, %s114
      %p123 = scmp.eq.s32.totalorder %s22, 0
      %p124 = por %p122, %p123
      %p125 = scmp.ne.s32.totalorder %s113, %s114
      %p126 = scmp.eq.s32.totalorder %s23, 3
      %p127 = por %p125, %p126
      %p129 = scmp.ne.s32.totalorder %s114, %s128
      %p130 = scmp.eq.s32.totalorder %s23, 0
      %p131 = por %p129, %p130
      %s133 = sadd.s32 %s132, 1
      %p136 = scmp.eq.s32.totalorder %s17, 3
      %p137 = scmp.ne.s32.totalorder %s132, %s134
      %p138 = scmp.eq.s32.totalorder %s17, 0
      %p139 = por %p137, %p138
      %p140 = scmp.ne.s32.totalorder %s132, %s134
      %p141 = scmp.eq.s32.totalorder %s22, 3
      %p142 = por %p140, %p141
      %p143 = scmp.ne.s32.totalorder %s134, %s135
      %p144 = scmp.eq.s32.totalorder %s22, 0
      %p145 = por %p143, %p144
      %p146 = scmp.ne.s32.totalorder %s134, %s135
      %p147 = scmp.eq.s32.totalorder %s23, 3
      %p148 = por %p146, %p147
      %p150 = scmp.ne.s32.totalorder %s135, %s149
      %p151 = scmp.eq.s32.totalorder %s23, 0
      %p152 = por %p150, %p151
      %s153 = smul.u32 %s25, %s24
      %s154 = smul.u32 %s32, %s36
      %s155 = ssub.s32 %s153, %s154
      %p156 = scmp.eq.s32.totalorder %s155, 0
      %s158 = sadd.s32 %s157, 1
      %s159 = scalar_select %p156, %s157, %s158
      %p162 = pneg %p156
      %p163 = scmp.eq.s32.totalorder %s17, 3
      %p164 = por %p162, %p163
      %p165 = scmp.ne.s32.totalorder %s157, %s160
      %p166 = scmp.eq.s32.totalorder %s17, 0
      %p167 = por %p165, %p166
      %p168 = scmp.ne.s32.totalorder %s157, %s160
      %p169 = scmp.eq.s32.totalorder %s22, 3
      %p170 = por %p168, %p169
      %p171 = scmp.ne.s32.totalorder %s160, %s161
      %p172 = scmp.eq.s32.totalorder %s22, 0
      %p173 = por %p171, %p172
      %p174 = scmp.ne.s32.totalorder %s160, %s161
      %p175 = scmp.eq.s32.totalorder %s23, 3
      %p176 = por %p174, %p175
      %p178 = scmp.ne.s32.totalorder %s161, %s177
      %p179 = scmp.eq.s32.totalorder %s23, 0
      %p180 = por %p178, %p179
      %p181 = scmp.le.s32.totalorder 1, %s17
      %p182 = scmp.lt.s32.totalorder %s17, 5
      %p183 = pnand %p181, %p182
      %p184 = pneg %p183
      // Predicated region
      $region9: #{tpu_custom_call.1} parent=5 // pred_check
        _
      $region10: #{tpu_custom_call.1} parent=5 // pred_check_branch
        %186 = sbr.rel (%p183) target = $region12
      $region11: #{tpu_custom_call.1} parent=5 // pred_region
        %s187 = ssub.s32 %s17, 1
        // Predicated region
        $region13: #{tpu_custom_call.1} parent=11 // pred_check
          %p188 = pneg %p82
        $region14: #{tpu_custom_call.1} parent=11 // pred_check_branch
          %190 = sbr.rel (%p188) target = $region16
        $region15: #{tpu_custom_call.1} parent=11 // pred_region
          _
        $region16: #{tpu_custom_call.1} parent=11 // pred_fallthru
          _
        // Predicated region
        $region17: #{tpu_custom_call.1} parent=11 // pred_check
          %p191 = pneg %p103
        $region18: #{tpu_custom_call.1} parent=11 // pred_check_branch
          %193 = sbr.rel (%p191) target = $region20
        $region19: #{tpu_custom_call.1} parent=11 // pred_region
          _
        $region20: #{tpu_custom_call.1} parent=11 // pred_fallthru
          _
        // Predicated region
        $region21: #{tpu_custom_call.1} parent=11 // pred_check
          %p194 = pneg %p124
        $region22: #{tpu_custom_call.1} parent=11 // pred_check_branch
          %196 = sbr.rel (%p194) target = $region24
        $region23: #{tpu_custom_call.1} parent=11 // pred_region
          _
        $region24: #{tpu_custom_call.1} parent=11 // pred_fallthru
          _
        // Predicated region
        $region25: #{tpu_custom_call.1} parent=11 // pred_check
          %p197 = pneg %p145
        $region26: #{tpu_custom_call.1} parent=11 // pred_check_branch
          %199 = sbr.rel (%p197) target = $region28
        $region27: #{tpu_custom_call.1} parent=11 // pred_region
          _
        $region28: #{tpu_custom_call.1} parent=11 // pred_fallthru
          _
      $region12: #{tpu_custom_call.1} parent=5 // pred_fallthru
        _
      %p200 = scmp.lt.s32.totalorder %s17, 4
      // Predicated region
      $region29: #{tpu_custom_call.1} parent=5 // pred_check
        %p201 = pneg %p200
      $region30: #{tpu_custom_call.1} parent=5 // pred_check_branch
        %203 = sbr.rel (%p201) target = $region32
      $region31: #{tpu_custom_call.1} parent=5 // pred_region
        // Predicated region
        $region33: #{tpu_custom_call.1} parent=31 // pred_check
          %p204 = pneg %p55
        $region34: #{tpu_custom_call.1} parent=31 // pred_check_branch
          %206 = sbr.rel (%p204) target = $region36
        $region35: #{tpu_custom_call.1} parent=31 // pred_region
          %s207 = sand.u32 %s45, 1
          %s208 = scalar_lea.sflag [#allocation8], %s207
          %s209 = sand.u32 %s45, 1
          %s210 = smul.addr %s209, 48
          %s211 = scalar_lea.vmem [#allocation7], %s210
          %s212 = ssub.s32 1, %s24
          %s213 = smul.u32 %s25, %s212
          %s214 = sadd.s32 %s213, %s24
          %s215 = smul.u32 2, %s214
          %217 = vsyncadd %s208, 0
          %s218 = smul.addr %s215, 4
          %s219 = scalar_lea.hbm %s0, %s218
          %s220 = sshll.u32 %s219, 4
          %s221 = int_to_ptr.hbm [resolvable:$true] %s220
          %s222 = sshll.u32 %s211, 4
          %s223 = int_to_ptr.vmem [resolvable:$true] %s222
          %228 = dma.hbm_to_vmem [thread:$0]  %s221, 768, %s223, %s208, 256, 128, 8
        $region36: #{tpu_custom_call.1} parent=31 // pred_fallthru
          _
      $region32: #{tpu_custom_call.1} parent=5 // pred_fallthru
        _
      %p229 = scmp.le.s32.totalorder 1, %s17
      %p230 = scmp.lt.s32.totalorder %s17, 5
      %p231 = pnand %p229, %p230
      %p232 = pneg %p231
      // Predicated region
      $region37: #{tpu_custom_call.1} parent=5 // pred_check
        _
      $region38: #{tpu_custom_call.1} parent=5 // pred_check_branch
        %234 = sbr.rel (%p231) target = $region40
      $region39: #{tpu_custom_call.1} parent=5 // pred_region
        %s235 = ssub.s32 %s17, 1
        %s236 = sand.u32 %s48, 1
        %s237 = scalar_lea.sflag [#allocation8], %s236
        %s238 = sand.u32 %s48, 1
        %s239 = smul.addr %s238, 48
        %s240 = scalar_lea.vmem [#allocation7], %s239
        // Predicated region
        $region41: #{tpu_custom_call.1} parent=39 // pred_check
          %p241 = pneg %p61
        $region42: #{tpu_custom_call.1} parent=39 // pred_check_branch
          %243 = sbr.rel (%p241) target = $region44
        $region43: #{tpu_custom_call.1} parent=39 // pred_region
          %245 = dma.done %s237, 768
        $region44: #{tpu_custom_call.1} parent=39 // pred_fallthru
          _
        %s246 = sand.u32 %s48, 1
        %s247 = scalar_lea.sflag [#allocation8], %s246
        %s248 = sand.u32 %s48, 1
        %s249 = smul.addr %s248, 48
        %s250 = scalar_lea.vmem [#allocation7], %s249
        %p251 = pneg %p61
        %p252 = pneg %p58
        %p253 = pneg %p82
        %p254 = pneg %p79
        %p255 = pneg %p103
        %p256 = pneg %p100
        %p257 = pneg %p124
        %p258 = pneg %p121
        %p259 = pneg %p145
        %p260 = pneg %p142
        %p261 = pneg %p173
        %p262 = pneg %p170
        %s263 = sand.u32 %s160, 1
        %s264 = scalar_lea.sflag [#allocation9], %s263
        %s265 = sand.u32 %s160, 1
        %s266 = smul.addr %s265, 16
        %s267 = scalar_lea.vmem [#allocation10], %s266
        %s268 = ssub.s32 1, %s26
        %s269 = smul.u32 %s27, %s268
        %s270 = sadd.s32 %s269, %s26
        %s271 = smul.u32 2, %s270
        %s272 = smul.u32 %s27, %s26
        %s273 = smul.u32 2, %s272
        %p275 = scmp.eq.s32.totalorder %s26, 0
        %p276 = scmp.eq.s32.totalorder %s27, 0
        %p277 = pnand %p275, %p276
        %p278 = pneg %p277
        // Predicated region
        $region45: #{tpu_custom_call.1} parent=39 // pred_check
          _
        $region46: #{tpu_custom_call.1} parent=39 // pred_check_branch
          %280 = sbr.rel (%p277) target = $region48
        $region47: #{tpu_custom_call.1} parent=39 // pred_region
          %vm281 = vcmask 7168
          %282 = vst.msk [vmem:[#allocation2] sm:$0xff] %vm281, 0.0
          %283 = vst.msk [vmem:[#allocation3] sm:$0xff] %vm281, 0.0
        $region48: #{tpu_custom_call.1} parent=39 // pred_fallthru
          _
        // Predicated region
        $region49: #{tpu_custom_call.1} parent=39 // pred_check
          %p284 = pneg %p275
        $region50: #{tpu_custom_call.1} parent=39 // pred_check_branch
          %286 = sbr.rel (%p284) target = $region52
        $region51: #{tpu_custom_call.1} parent=39 // pred_region
          %v287 = vld [vmem:[%s1] sm:$0xf]
          %v288 = vld [vmem:[%s240] sm:$0xff]
          %v289 = vld [vmem:[%s240 + $0x8] sm:$0xff]
          %v290 = vld [vmem:[%s240 + $0x10] sm:$0xff]
          %v291 = vld [vmem:[%s240 + $0x18] sm:$0xff]
          %v292 = vld [vmem:[%s240 + $0x20] sm:$0xff]
          %v293 = vld [vmem:[%s240 + $0x28] sm:$0xff]
          %v294 = vld [vmem:[%s2] sm:$0xff]
          %296 = vset.pattern.permute.xlu0 0
          %297 = vperm.xlu0 %296, %v294
          %v298 = vpop.permute.xlu0 %297
          %v306 = vunpack.c.l.b16 %v288
          %v307 = vunpack.c.h.b16 %v288
          %v308 = vunpack.c.l.b16 %v289
          %v309 = vunpack.c.h.b16 %v289
          %v310 = vunpack.c.l.b16 %v290
          %v311 = vunpack.c.h.b16 %v290
          %v312 = vunpack.c.l.b16 %v291
          %v313 = vunpack.c.h.b16 %v291
          %v314 = vunpack.c.l.b16 %v292
          %v315 = vunpack.c.h.b16 %v292
          %v316 = vunpack.c.l.b16 %v293
          %v317 = vunpack.c.h.b16 %v293
          %v318 = vpack.c.b16 %v308, %v306
          %v319 = vpack.c.b16 %v309, %v307
          %v320 = vpack.c.b16 %v312, %v310
          %v321 = vpack.c.b16 %v313, %v311
          %v322 = vpack.c.b16 %v316, %v314
          %v323 = vpack.c.b16 %v317, %v315
          %vm330 = vcmask 392192
          %v332 = vsel %vm330, %v287, 0
          %334 = vmatpush.bf16.msra.mxu0 0
          %335 = vmatpush.bf16.msra.mxu0 0
          %336 = vmatpush.bf16.msra.mxu0 0
          %337 = vmatpush.bf16.msra.mxu0 0
          %338 = vmatpush.bf16.msra.mxu0 0
          %339 = vmatpush.bf16.msra.mxu0 %v322
          %340 = vmatpush.bf16.msra.mxu0 %v320
          %341 = vmatpush.bf16.msra.mxu0 %v318
          %342 = vmatmul.bf16.gmra.mxu0 %v332
          %v343 = vpop.f32.mrf.mxu0
          %v344 = vadd.f32 %v298, %v343
          %v345 = vpop.f32.mrf.mxu0
          %346 = vdwg.mxu0
          %347 = vmatpush.bf16.msra.mxu0 0
          %348 = vmatpush.bf16.msra.mxu0 0
          %349 = vmatpush.bf16.msra.mxu0 0
          %350 = vmatpush.bf16.msra.mxu0 0
          %351 = vmatpush.bf16.msra.mxu0 0
          %352 = vmatpush.bf16.msra.mxu0 %v323
          %353 = vmatpush.bf16.msra.mxu0 %v321
          %354 = vmatpush.bf16.msra.mxu0 %v319
          %355 = vmatmul.bf16.gmra.mxu0 %v332
          %v356 = vpop.f32.mrf.mxu0
          %v357 = vadd.f32 %v298, %v356
          %v358 = vpop.f32.mrf.mxu0
          %359 = vdwg.mxu0
          %v360 = vmax.f32 %v344, 0.0
          %v361 = vmax.f32 %v357, 0.0
          %s362 = smul.u32 %s27, 2
          %s363 = smul.addr %s362, 8
          %s364 = scalar_lea.vmem [#allocation6], %s363
          %365 = vst [vmem:[%s364] sm:$0xff] %v360
          %366 = vst [vmem:[%s364 + $0x8] sm:$0xff] %v361
          %s367 = smul.u32 %s27, 256
          %v368 = vlaneseq
          %v369 = vand.u32 %v368, 127
          %v370 = vadd.s32 %v369, 128
          %v371 = vstv %s367
          %v372 = vadd.s32 %v371, %v369
          %v373 = vadd.s32 %v371, %v370
          %vm374 = vcmp.lt.s32.totalorder %v372, 392
          %vm375 = vcmp.lt.s32.totalorder %v373, 392
          %v376 = vsel %vm374, %v360, 0.0
          %v377 = vsel %vm375, %v361, 0.0
          %v378 = vld [vmem:[#allocation2] sm:$0xff]
          %v379 = vadd.f32 %v376, %v377
          %380 = vadd.xlane.f32.xlu0 %v379
          %v381 = vpop.xlane.xlu0 %380
          %v382 = vadd.f32 %v378, %v381
          %vm383 = vcmask 7168
          %384 = vst.msk [vmem:[#allocation2] sm:$0xff] %vm383, %v382
          %v385 = vld [vmem:[#allocation3] sm:$0xff]
          %v386 = vmul.f32 %v376, %v376
          %v387 = vmul.f32 %v377, %v377
          %v388 = vadd.f32 %v386, %v387
          %389 = vadd.xlane.f32.xlu0 %v388
          %v390 = vpop.xlane.xlu0 %389
          %v391 = vadd.f32 %v385, %v390
          %392 = vst.msk [vmem:[#allocation3] sm:$0xff] %vm383, %v391
        $region52: #{tpu_custom_call.1} parent=39 // pred_fallthru
          _
        %p393 = scmp.eq.s32.totalorder %s26, 1
        %p394 = pnand %p393, %p276
        %p395 = pneg %p394
        // Predicated region
        $region53: #{tpu_custom_call.1} parent=39 // pred_check
          _
        $region54: #{tpu_custom_call.1} parent=39 // pred_check_branch
          %397 = sbr.rel (%p394) target = $region56
        $region55: #{tpu_custom_call.1} parent=39 // pred_region
          %v398 = vld [vmem:[#allocation2] sm:$0xff]
          %v399 = vmul.f32 %v398, 0.0025510204
          %v400 = vld [vmem:[#allocation3] sm:$0xff]
          %v401 = vmul.f32 %v400, 0.0025510204
          %v402 = vmul.f32 %v399, %v399
          %v403 = vsub.f32 %v401, %v402
          %v404 = vmax.f32 %v403, 0.0
          %v405 = vld [vmem:[%s3] sm:$0xff]
          %v406 = vadd.f32 %v404, 1e-05
          %v407 = vrsqrt.pop %v406
          %v408 = vmul.f32 %v407, %v406
          %v409 = vmul.f32 %v408, %v407
          %v410 = vmul.f32 0.5, %v409
          %v411 = vsub.f32 1.5, %v410
          %v412 = vmul.f32 %v407, %v411
          %vm413 = vweird.f32 %v406
          %vm414 = vweird.f32 %v407
          %vm415 = vmor %vm413, %vm414
          %v416 = vsel %vm415, %v407, %v412
          %v417 = vmul.f32 %v405, %v416
          %vm418 = vcmask 7168
          %419 = vst.msk [vmem:[#allocation4] sm:$0xff] %vm418, %v417
          %v420 = vld [vmem:[%s4] sm:$0xff]
          %v421 = vmul.f32 %v399, %v417
          %v422 = vsub.f32 %v420, %v421
          %423 = vst.msk [vmem:[#allocation5] sm:$0xff] %vm418, %v422
        $region56: #{tpu_custom_call.1} parent=39 // pred_fallthru
          _
        // Predicated region
        $region57: #{tpu_custom_call.1} parent=39 // pred_check
          %p424 = pneg %p393
        $region58: #{tpu_custom_call.1} parent=39 // pred_check_branch
          %426 = sbr.rel (%p424) target = $region60
        $region59: #{tpu_custom_call.1} parent=39 // pred_region
          %s427 = smul.u32 %s27, 2
          %s428 = smul.addr %s427, 8
          %s429 = scalar_lea.vmem [#allocation6], %s428
          %v430 = vld [vmem:[%s429] sm:$0xff]
          %v431 = vld [vmem:[%s429 + $0x8] sm:$0xff]
          %v432 = vld [vmem:[#allocation4] sm:$0xff]
          %434 = vset.pattern.permute.xlu0 0
          %435 = vperm.xlu0 %434, %v432
          %v436 = vpop.permute.xlu0 %435
          %v438 = vmul.f32 %v430, %v436
          %v439 = vmul.f32 %v431, %v436
          %v440 = vld [vmem:[#allocation5] sm:$0xff]
          %442 = vset.pattern.permute.xlu0 0
          %443 = vperm.xlu0 %442, %v440
          %v444 = vpop.permute.xlu0 %443
          %v446 = vadd.f32 %v438, %v444
          %v447 = vadd.f32 %v439, %v444
          %448 = vst [vmem:[%s267] sm:$0xff] %v446
          %449 = vst [vmem:[%s267 + $0x8] sm:$0xff] %v447
        $region60: #{tpu_custom_call.1} parent=39 // pred_fallthru
          _
        %s450 = sand.u32 %s160, 1
        %s451 = scalar_lea.sflag [#allocation9], %s450
        %s452 = sand.u32 %s160, 1
        %s453 = smul.addr %s452, 16
        %s454 = scalar_lea.vmem [#allocation10], %s453
        // Predicated region
        $region61: #{tpu_custom_call.1} parent=39 // pred_check
          %p455 = pneg %p170
        $region62: #{tpu_custom_call.1} parent=39 // pred_check_branch
          %457 = sbr.rel (%p455) target = $region64
        $region63: #{tpu_custom_call.1} parent=39 // pred_region
          %s458 = smul.u32 %s27, %s26
          %s459 = smul.u32 2, %s458
          %461 = vsyncadd %s451, 0
          %s462 = smul.addr %s459, 8
          %s463 = scalar_lea.hbm %s5, %s462
          %s465 = sshll.u32 %s454, 4
          %s466 = int_to_ptr.vmem [resolvable:$true] %s465
          %s467 = sshll.u32 %s463, 4
          %s468 = int_to_ptr.hbm [resolvable:$true] %s467
          %470 = dma.vmem_to_hbm [thread:$0]  %s466, 256, %s468, %s451
        $region64: #{tpu_custom_call.1} parent=39 // pred_fallthru
          _
      $region40: #{tpu_custom_call.1} parent=5 // pred_fallthru
        _
      %p471 = scmp.le.s32.totalorder 2, %s17
      // Predicated region
      $region65: #{tpu_custom_call.1} parent=5 // pred_check
        %p472 = pneg %p471
      $region66: #{tpu_custom_call.1} parent=5 // pred_check_branch
        %474 = sbr.rel (%p472) target = $region68
      $region67: #{tpu_custom_call.1} parent=5 // pred_region
        %s475 = ssub.s32 %s17, 2
        // Predicated region
        $region69: #{tpu_custom_call.1} parent=67 // pred_check
          %p476 = pneg %p176
        $region70: #{tpu_custom_call.1} parent=67 // pred_check_branch
          %478 = sbr.rel (%p476) target = $region72
        $region71: #{tpu_custom_call.1} parent=67 // pred_region
          %s479 = sand.u32 %s161, 1
          %s480 = scalar_lea.sflag [#allocation9], %s479
          %s481 = sand.u32 %s161, 1
          %s482 = smul.addr %s481, 16
          %s483 = scalar_lea.vmem [#allocation10], %s482
          %485 = dma.done %s480, 256
        $region72: #{tpu_custom_call.1} parent=67 // pred_fallthru
          _
      $region68: #{tpu_custom_call.1} parent=5 // pred_fallthru
        _
    $region6: #{tpu_custom_call.1} parent=1 // loop_footer
      %s21 = sadd.s32 1, %s17
    $region7: #{tpu_custom_call.1} parent=1 // loop_footer_branch
      %16 = sbr.rel target = $region3
    $region8: #{tpu_custom_call.1} parent=1 // loop_exit
      _
    %486 = vsyncpa [#allocation8], 1
    %s487 = scalar_lea.sflag [#allocation8], 1
    %488 = vsyncpa %s487, 1
    %489 = vsyncpa [#allocation9], 1
    %s490 = scalar_lea.sflag [#allocation9], 1
    %491 = vsyncpa %s490, 1

</llo_original>
